<compile_context>
chip_gen: v7x
topology: tpu7x:2x2x1
jax: 0.10.0
libtpu: 0.0.40
codegen_flags: <defaults>
</compile_context>

<pallas_src>
import functools

import jax
import jax.numpy as jnp
from jax import lax
from jax.experimental import pallas as pl
from jax.experimental.pallas import tpu as pltpu

_MIB = 1024 * 1024

# Leading "parallel" grid axis: shards the row stream across both TensorCores on
# megacore parts (v7x); on single-TC chips (v5e/v6e) it is just a loop split.
_CORE_SPLIT = 2


def _round_up(x, m):
    return ((x + m - 1) // m) * m


@functools.lru_cache(maxsize=None)
def _vmem_limit_bytes():
    """Scoped-VMEM limit budgeted against the actual chip's VMEM capacity."""
    cap = 64 * _MIB  # conservative default == v7x per-TensorCore capacity
    try:
        info = pltpu.get_tpu_info()
        reported = int(getattr(info, "vmem_capacity_bytes", 0) or 0)
        if reported > 0:
            cap = reported
    except Exception:
        pass
    # <= 48 MiB is safe on every generation (v7x: 64 MiB/TC, v5e/v6e: 128 MiB)
    # and far above what near-roofline streaming tiles need for this kernel.
    return max(16 * _MIB, min(cap * 3 // 4, 48 * _MIB))


def _pick_row_tile(batch, seq_len, itemsizes, vmem_limit):
    """Largest row tile (multiple of 8) whose 3 double-buffered input tiles fit
    ~60% of the scoped-VMEM limit, targeting >= ~2 MiB of DMA per grid step."""
    bytes_per_row = seq_len * sum(itemsizes)
    budget = int(0.60 * vmem_limit)                       # 3 inputs x 2 buffers
    tb_cap = max(8, (budget // (2 * bytes_per_row)) // 8 * 8)
    tb_target = _round_up(max(1, (2 * _MIB) // bytes_per_row), 8)
    tb = min(tb_cap, max(512, tb_target))                 # amortize ~0.35us/step
    rows_per_core = _round_up(-(-batch // _CORE_SPLIT), 8)
    tb = max(8, min(tb, rows_per_core))                   # don't over-allocate tiny B
    if batch < 8:
        tb = batch                                        # full-extent block (exempt)
    return tb


def _sum2d(x):
    """Full reduction to a (1, 1) array (lane reduce then sublane reduce)."""
    return jnp.sum(jnp.sum(x, axis=1, keepdims=True), axis=0, keepdims=True)


def _reward_criterion_kernel(logp_ref, seq_ref, reward_ref, num_ref, den_ref, *, batch):
    c = pl.program_id(0)                  # TensorCore shard (parallel axis)
    i = pl.program_id(1)                  # row-tile index within this core (reduction)
    tiles_per_core = pl.num_programs(1)
    tb, t = logp_ref.shape

    # Per-core partials live in the resident output block (same block index for
    # every i): init at the first reduction step, accumulate afterwards.
    @pl.when(i == 0)
    def _():
        num_ref[...] = jnp.zeros_like(num_ref)
        den_ref[...] = jnp.zeros_like(den_ref)

    # Row-validity mask: rows at/after `batch` belong either to the padded
    # partial last tile or to a clamped overflow tile of the per-core split.
    row_start = (c * tiles_per_core + i) * tb
    rows = lax.broadcasted_iota(jnp.int32, (tb, 1), 0)
    row_ok = (row_start + rows) < batch                          # (tb, 1) bool

    # Native-dtype ingest; cast to f32 on the VPU (hidden under the DMA).
    p = -(logp_ref[...].astype(jnp.float32)) * reward_ref[...].astype(jnp.float32)
    valid = seq_ref[...] > 0                                     # (tb, t) bool

    # mask[:, 0] == 1 for every real row.
    num = _sum2d(jnp.where(row_ok, p[:, 0:1], 0.0))
    den = _sum2d(row_ok.astype(jnp.float32))

    # mask[:, k] = (seq[:, k-1] > 0) for k >= 1 : folded in as aligned slices,
    # no roll / concat / cross-lane shuffle needed.
    if t > 1:
        w = jnp.logical_and(row_ok, valid[:, 0:t - 1])           # (tb, t-1)
        num = num + _sum2d(jnp.where(w, p[:, 1:t], 0.0))
        den = den + _sum2d(w.astype(jnp.float32))

    num_ref[...] += jnp.reshape(num, (1, 1, 1))
    den_ref[...] += jnp.reshape(den, (1, 1, 1))


@jax.jit
def reward_criterion(sample_logprobs, seq, reward):
    """sample_logprobs: (B, T) float, seq: (B, T) int, reward: (B, T) float -> scalar.

    Inputs are consumed in their native dtypes (bf16 log-probs / rewards are
    fine); all accumulation is float32.
    """
    B, T = sample_logprobs.shape
    itemsizes = (jnp.dtype(sample_logprobs.dtype).itemsize,
                 jnp.dtype(seq.dtype).itemsize,
                 jnp.dtype(reward.dtype).itemsize)
    vmem_limit = _vmem_limit_bytes()
    tb = _pick_row_tile(B, T, itemsizes, vmem_limit)

    total_tiles = -(-B // tb)
    tiles_per_core = -(-total_tiles // _CORE_SPLIT)
    grid = (_CORE_SPLIT, tiles_per_core)
    last_tile = total_tiles - 1

    def row_map(c, i):
        # Clamp the overflow tiles of the per-core split; their rows are masked
        # out inside the kernel (row_start >= B so they contribute zero).
        return (jnp.minimum(c * tiles_per_core + i, last_tile), 0)

    row_spec = pl.BlockSpec((tb, T), row_map)
    part_spec = pl.BlockSpec((1, 1, 1), lambda c, i: (c, 0, 0))
    part_shape = jax.ShapeDtypeStruct((_CORE_SPLIT, 1, 1), jnp.float32)

    in_bytes = B * T * sum(itemsizes)
    num_part, den_part = pl.pallas_call(
        functools.partial(_reward_criterion_kernel, batch=B),
        out_shape=(part_shape, part_shape),
        grid_spec=pltpu.PrefetchScalarGridSpec(
            num_scalar_prefetch=0,
            grid=grid,
            in_specs=[row_spec, row_spec, row_spec],
            out_specs=(part_spec, part_spec),
        ),
        compiler_params=pltpu.CompilerParams(
            dimension_semantics=("parallel", "arbitrary"),
            vmem_limit_bytes=vmem_limit,
        ),
        cost_estimate=pl.CostEstimate(
            flops=5 * B * T,
            transcendentals=0,
            bytes_accessed=in_bytes + 2 * _CORE_SPLIT * 4,
        ),
    )(sample_logprobs, seq, reward)

    # Tiny cross-core combine outside the kernel (per-sequence reward as (B,1)
    # would drop one input stream entirely, but the reference module takes a
    # full (B,T) reward, so semantics are kept as-is).
    return jnp.sum(num_part) / jnp.sum(den_part)


def _reference(sample_logprobs, seq, reward):
    B = seq.shape[0]
    mask = (seq > 0).astype(jnp.float32)
    mask = jnp.concatenate([jnp.ones((B, 1), jnp.float32), mask[:, :-1]], axis=1)
    return jnp.sum(-sample_logprobs * reward * mask) / jnp.sum(mask)


if __name__ == "__main__":
    key = jax.random.PRNGKey(0)
    k1, k2, k3, k4, k5, k6 = jax.random.split(key, 6)

    # Small shapes consistent with the module: (batch, seq_len) per-token arrays.
    B, T = 2, 8
    sample_logprobs = -jnp.abs(jax.random.normal(k1, (B, T), dtype=jnp.float32))
    seq = jax.random.randint(k2, (B, T), 0, 5, dtype=jnp.int32)   # zeros = padding/EOS
    reward = jax.random.normal(k3, (B, T), dtype=jnp.float32)

    loss = jax.block_until_ready(reward_criterion(sample_logprobs, seq, reward))
    ref = _reference(sample_logprobs, seq, reward)
    assert loss.shape == ()
    assert jnp.allclose(loss, ref, rtol=1e-5, atol=1e-5), (float(loss), float(ref))

    # Second case exercising the cdiv + masked-rows + 2-core-split paths
    # (B not divisible by the row tile).
    B2, T2 = 20, 16
    lp2 = -jnp.abs(jax.random.normal(k4, (B2, T2), dtype=jnp.float32))
    sq2 = jax.random.randint(k5, (B2, T2), 0, 4, dtype=jnp.int32)
    rw2 = jax.random.normal(k6, (B2, T2), dtype=jnp.float32)

    loss2 = jax.block_until_ready(reward_criterion(lp2, sq2, rw2))
    ref2 = _reference(lp2, sq2, rw2)
    assert loss2.shape == ()
    assert jnp.allclose(loss2, ref2, rtol=1e-5, atol=1e-5), (float(loss2), float(ref2))

    print("KERNEL_OK")
</pallas_src>

<mosaic_0001>
module attributes {stable_mosaic.version = 11 : i64} {
  func.func @_reward_criterion_kernel(%arg0: i32, %arg1: i32, %arg2: memref<2x8xf32, #tpu.memory_space<vmem>>, %arg3: memref<2x8xi32, #tpu.memory_space<vmem>>, %arg4: memref<2x8xf32, #tpu.memory_space<vmem>>, %arg5: memref<1x1x1xf32, #tpu.memory_space<vmem>>, %arg6: memref<1x1x1xf32, #tpu.memory_space<vmem>>) attributes {dimension_semantics = [#tpu.dimension_semantics<parallel>, #tpu.dimension_semantics<arbitrary>], iteration_bounds = array<i64: 2, 1>, scalar_prefetch = 0 : i64, scratch_operands = 0 : i64, tpu.core_type = #tpu.core_type<tc>, window_params = [{transform_indices = @transform_0, window_bounds = array<i64: 2, 8>}, {transform_indices = @transform_1, window_bounds = array<i64: 2, 8>}, {transform_indices = @transform_2, window_bounds = array<i64: 2, 8>}, {transform_indices = @transform_3, window_bounds = array<i64: 1, 1, 1>}, {transform_indices = @transform_4, window_bounds = array<i64: 1, 1, 1>}]} {
    %c0_i32 = arith.constant 0 : i32
    %0 = arith.cmpi eq, %arg1, %c0_i32 : i32
    %1 = arith.extui %0 : i1 to i32
    %c0_i32_0 = arith.constant 0 : i32
    %2 = arith.cmpi ne, %1, %c0_i32_0 : i32
    scf.if %2 {
      %cst_30 = arith.constant 0.000000e+00 : f32
      %58 = vector.broadcast %cst_30 : f32 to vector<1x1x1xf32>
      %c0_31 = arith.constant 0 : index
      %c0_32 = arith.constant 0 : index
      %c0_33 = arith.constant 0 : index
      %59 = vector.load %arg5[%c0_31, %c0_32, %c0_33] : memref<1x1x1xf32, #tpu.memory_space<vmem>>, vector<1x1x1xf32>
      tpu.vector_store %arg5[%c0_31, %c0_32, %c0_33], %58 {strides = array<i32>} : memref<1x1x1xf32, #tpu.memory_space<vmem>>, vector<1x1x1xf32>,
      %cst_34 = arith.constant 0.000000e+00 : f32
      %60 = vector.broadcast %cst_34 : f32 to vector<1x1x1xf32>
      %c0_35 = arith.constant 0 : index
      %c0_36 = arith.constant 0 : index
      %c0_37 = arith.constant 0 : index
      %61 = vector.load %arg6[%c0_35, %c0_36, %c0_37] : memref<1x1x1xf32, #tpu.memory_space<vmem>>, vector<1x1x1xf32>
      tpu.vector_store %arg6[%c0_35, %c0_36, %c0_37], %60 {strides = array<i32>} : memref<1x1x1xf32, #tpu.memory_space<vmem>>, vector<1x1x1xf32>,
    } else {
    }
    %c1_i32 = arith.constant 1 : i32
    %3 = arith.muli %arg0, %c1_i32 : i32
    %4 = arith.addi %3, %arg1 : i32
    %c2_i32 = arith.constant 2 : i32
    %5 = arith.muli %4, %c2_i32 : i32
    %6 = tpu.iota {dimensions = array<i32: 0>} : vector<2x1xi32>
    %7 = vector.broadcast %5 : i32 to vector<2x1xi32>
    %8 = arith.addi %7, %6 : vector<2x1xi32>
    %c2_i32_1 = arith.constant 2 : i32
    %9 = vector.broadcast %c2_i32_1 : i32 to vector<2x1xi32>
    %10 = arith.cmpi slt, %8, %9 : vector<2x1xi32>
    %c0 = arith.constant 0 : index
    %c0_2 = arith.constant 0 : index
    %11 = vector.load %arg2[%c0, %c0_2] : memref<2x8xf32, #tpu.memory_space<vmem>>, vector<2x8xf32>
    %cst = arith.constant 0.000000e+00 : f32
    %12 = vector.broadcast %cst : f32 to vector<2x8xf32>
    %13 = arith.subf %12, %11 : vector<2x8xf32>
    %c0_3 = arith.constant 0 : index
    %c0_4 = arith.constant 0 : index
    %14 = vector.load %arg4[%c0_3, %c0_4] : memref<2x8xf32, #tpu.memory_space<vmem>>, vector<2x8xf32>
    %15 = arith.mulf %13, %14 : vector<2x8xf32>
    %c0_5 = arith.constant 0 : index
    %c0_6 = arith.constant 0 : index
    %16 = vector.load %arg3[%c0_5, %c0_6] : memref<2x8xi32, #tpu.memory_space<vmem>>, vector<2x8xi32>
    %c0_i32_7 = arith.constant 0 : i32
    %17 = vector.broadcast %c0_i32_7 : i32 to vector<2x8xi32>
    %18 = arith.cmpi sgt, %16, %17 : vector<2x8xi32>
    %19 = vector.extract_strided_slice %15 {offsets = [0, 0], sizes = [2, 1], strides = [1, 1]} : vector<2x8xf32> to vector<2x1xf32>
    %cst_8 = arith.constant 0.000000e+00 : f32
    %20 = vector.broadcast %cst_8 : f32 to vector<2x1xf32>
    %21 = arith.select %10, %19, %20 : vector<2x1xi1>, vector<2x1xf32>
    %cst_9 = arith.constant dense<0.000000e+00> : vector<2xf32>
    %22 = vector.multi_reduction <add>, %21, %cst_9 [1] : vector<2x1xf32> to vector<2xf32>
    %23 = vector.shape_cast %22 : vector<2xf32> to vector<2x1xf32>
    %cst_10 = arith.constant dense<0.000000e+00> : vector<1xf32>
    %24 = vector.multi_reduction <add>, %23, %cst_10 [0] : vector<2x1xf32> to vector<1xf32>
    %25 = vector.shape_cast %24 : vector<1xf32> to vector<1x1xf32>
    %26 = arith.extui %10 : vector<2x1xi1> to vector<2x1xi32>
    %27 = arith.sitofp %26 : vector<2x1xi32> to vector<2x1xf32>
    %cst_11 = arith.constant dense<0.000000e+00> : vector<2xf32>
    %28 = vector.multi_reduction <add>, %27, %cst_11 [1] : vector<2x1xf32> to vector<2xf32>
    %29 = vector.shape_cast %28 : vector<2xf32> to vector<2x1xf32>
    %cst_12 = arith.constant dense<0.000000e+00> : vector<1xf32>
    %30 = vector.multi_reduction <add>, %29, %cst_12 [0] : vector<2x1xf32> to vector<1xf32>
    %31 = vector.shape_cast %30 : vector<1xf32> to vector<1x1xf32>
    %32 = vector.extract_strided_slice %18 {offsets = [0, 0], sizes = [2, 7], strides = [1, 1]} : vector<2x8xi1> to vector<2x7xi1>
    %33 = vector.broadcast %10 : vector<2x1xi1> to vector<2x7xi1>
    %34 = arith.andi %33, %32 : vector<2x7xi1>
    %35 = vector.extract_strided_slice %15 {offsets = [0, 1], sizes = [2, 7], strides = [1, 1]} : vector<2x8xf32> to vector<2x7xf32>
    %cst_13 = arith.constant 0.000000e+00 : f32
    %36 = vector.broadcast %cst_13 : f32 to vector<2x7xf32>
    %37 = arith.select %34, %35, %36 : vector<2x7xi1>, vector<2x7xf32>
    %cst_14 = arith.constant dense<0.000000e+00> : vector<2xf32>
    %38 = vector.multi_reduction <add>, %37, %cst_14 [1] : vector<2x7xf32> to vector<2xf32>
    %39 = vector.shape_cast %38 : vector<2xf32> to vector<2x1xf32>
    %cst_15 = arith.constant dense<0.000000e+00> : vector<1xf32>
    %40 = vector.multi_reduction <add>, %39, %cst_15 [0] : vector<2x1xf32> to vector<1xf32>
    %41 = vector.shape_cast %40 : vector<1xf32> to vector<1x1xf32>
    %42 = arith.addf %25, %41 : vector<1x1xf32>
    %43 = arith.extui %34 : vector<2x7xi1> to vector<2x7xi32>
    %44 = arith.sitofp %43 : vector<2x7xi32> to vector<2x7xf32>
    %cst_16 = arith.constant dense<0.000000e+00> : vector<2xf32>
    %45 = vector.multi_reduction <add>, %44, %cst_16 [1] : vector<2x7xf32> to vector<2xf32>
    %46 = vector.shape_cast %45 : vector<2xf32> to vector<2x1xf32>
    %cst_17 = arith.constant dense<0.000000e+00> : vector<1xf32>
    %47 = vector.multi_reduction <add>, %46, %cst_17 [0] : vector<2x1xf32> to vector<1xf32>
    %48 = vector.shape_cast %47 : vector<1xf32> to vector<1x1xf32>
    %49 = arith.addf %31, %48 : vector<1x1xf32>
    %c0_18 = arith.constant 0 : index
    %c0_19 = arith.constant 0 : index
    %c0_20 = arith.constant 0 : index
    %50 = vector.load %arg5[%c0_18, %c0_19, %c0_20] : memref<1x1x1xf32, #tpu.memory_space<vmem>>, vector<1x1x1xf32>
    %51 = vector.shape_cast %42 : vector<1x1xf32> to vector<1x1x1xf32>
    %52 = arith.addf %50, %51 : vector<1x1x1xf32>
    %c0_21 = arith.constant 0 : index
    %c0_22 = arith.constant 0 : index
    %c0_23 = arith.constant 0 : index
    %53 = vector.load %arg5[%c0_21, %c0_22, %c0_23] : memref<1x1x1xf32, #tpu.memory_space<vmem>>, vector<1x1x1xf32>
    tpu.vector_store %arg5[%c0_21, %c0_22, %c0_23], %52 {strides = array<i32>} : memref<1x1x1xf32, #tpu.memory_space<vmem>>, vector<1x1x1xf32>,
    %c0_24 = arith.constant 0 : index
    %c0_25 = arith.constant 0 : index
    %c0_26 = arith.constant 0 : index
    %54 = vector.load %arg6[%c0_24, %c0_25, %c0_26] : memref<1x1x1xf32, #tpu.memory_space<vmem>>, vector<1x1x1xf32>
    %55 = vector.shape_cast %49 : vector<1x1xf32> to vector<1x1x1xf32>
    %56 = arith.addf %54, %55 : vector<1x1x1xf32>
    %c0_27 = arith.constant 0 : index
    %c0_28 = arith.constant 0 : index
    %c0_29 = arith.constant 0 : index
    %57 = vector.load %arg6[%c0_27, %c0_28, %c0_29] : memref<1x1x1xf32, #tpu.memory_space<vmem>>, vector<1x1x1xf32>
    tpu.vector_store %arg6[%c0_27, %c0_28, %c0_29], %56 {strides = array<i32>} : memref<1x1x1xf32, #tpu.memory_space<vmem>>, vector<1x1x1xf32>,
    return
  }
  func.func @transform_0(%arg0: i32, %arg1: i32) -> (i32, i32) {
    %c1_i32 = arith.constant 1 : i32
    %0 = arith.muli %arg0, %c1_i32 : i32
    %1 = arith.addi %0, %arg1 : i32
    %c0_i32 = arith.constant 0 : i32
    %2 = arith.minsi %1, %c0_i32 : i32
    %c0_i32_0 = arith.constant 0 : i32
    %c0_i32_1 = arith.constant 0 : i32
    return %2, %c0_i32_0 : i32, i32
  }
  func.func @transform_1(%arg0: i32, %arg1: i32) -> (i32, i32) {
    %c1_i32 = arith.constant 1 : i32
    %0 = arith.muli %arg0, %c1_i32 : i32
    %1 = arith.addi %0, %arg1 : i32
    %c0_i32 = arith.constant 0 : i32
    %2 = arith.minsi %1, %c0_i32 : i32
    %c0_i32_0 = arith.constant 0 : i32
    %c0_i32_1 = arith.constant 0 : i32
    return %2, %c0_i32_0 : i32, i32
  }
  func.func @transform_2(%arg0: i32, %arg1: i32) -> (i32, i32) {
    %c1_i32 = arith.constant 1 : i32
    %0 = arith.muli %arg0, %c1_i32 : i32
    %1 = arith.addi %0, %arg1 : i32
    %c0_i32 = arith.constant 0 : i32
    %2 = arith.minsi %1, %c0_i32 : i32
    %c0_i32_0 = arith.constant 0 : i32
    %c0_i32_1 = arith.constant 0 : i32
    return %2, %c0_i32_0 : i32, i32
  }
  func.func @transform_3(%arg0: i32, %arg1: i32) -> (i32, i32, i32) {
    %c0_i32 = arith.constant 0 : i32
    %c0_i32_0 = arith.constant 0 : i32
    %c0_i32_1 = arith.constant 0 : i32
    return %arg0, %c0_i32, %c0_i32_0 : i32, i32, i32
  }
  func.func @transform_4(%arg0: i32, %arg1: i32) -> (i32, i32, i32) {
    %c0_i32 = arith.constant 0 : i32
    %c0_i32_0 = arith.constant 0 : i32
    %c0_i32_1 = arith.constant 0 : i32
    return %arg0, %c0_i32, %c0_i32_0 : i32, i32, i32
  }
}

</mosaic_0001>

<llo_original>
// kernel: reward_criterion.1
$region0: #{reward_criterion.1}
  #allocation0 [shape = 'u32[]', space=smem, size = 0x4, offset = 0x4, fixed_abs, tag = 'smem constant byte address 0x4 - core index']
  #allocation1 [shape = 'u32[144,128]{1,0:T(1,128)}', space=vmem, size = 0x12000, scoped, tag = 'internal scratch']
  %s0 = inlined_call_operand.hbm [shape: f32[2,8], index: 0, kind: input, shape index: {}]
  %s1 = inlined_call_operand.vmem [shape: s32[2,8], index: 1, kind: input, shape index: {}]
  %s2 = inlined_call_operand.vmem [shape: f32[2,8], index: 2, kind: input, shape index: {}]
  %s3 = inlined_call_operand.vmem [shape: f32[2,1,1], index: 3, kind: output, shape index: {0}]
  %s4 = inlined_call_operand.vmem [shape: f32[2,1,1], index: 4, kind: output, shape index: {1}]
  %5 = xla_tuple %s3, %s4
  %s6 = sld [smem:[#allocation0]]
  $region61: #{reward_criterion.1} parent=0
    _
  %s8 = ssub.s32 1, %s6
  %s9 = scalar_select 0, %s8, %s6
  $region1: #{reward_criterion.1} parent=0
    #allocation2 [shape = 'u8[2048]{0}', space=vmem, size = 0x800, scoped, tag = 'input window, operand 0']
    #allocation3 [shape = 's32[2]{0}', space=sflag, size = 0x8, scoped, tag = 'scoped memory for reward_criterion.1']
    %10 = vsyncpa [#allocation3], 0
    %s11 = scalar_lea.sflag [#allocation3], 1
    %12 = vsyncpa %s11, 0
    loop: start=0, step=1, limit=4
    $region2: #{reward_criterion.1} parent=1 // loop_pre_header
      _
    $region3: #{reward_criterion.1} parent=1 // loop_header
      %s14 = sphi 0, %s18
      %p15 = scmp.ge.s32.totalorder %s14, 4
      %s21 = sphi 0, %s33
      %s22 = sphi 0, %s29
      %s23 = sphi 0, %s21
      %s24 = sphi 0, %s22
      %s25 = sphi 0, %s23
      %s26 = sphi 0, %s24
      %s42 = sphi 0, %s44
      %s45 = sphi 0, %s42
      %s46 = sphi 0, %s45
      %s62 = sphi 0, %s46
      %s74 = sphi 0, %s76
      %s77 = sphi 0, %s74
      %s78 = sphi 0, %s77
      %s94 = sphi 0, %s78
      %s106 = sphi 0, %s108
      %s109 = sphi 0, %s106
      %s110 = sphi 0, %s109
      %s126 = sphi 0, %s110
      %s132 = sphi 0, %s134
      %s135 = sphi 0, %s132
      %s136 = sphi 0, %s135
      %s152 = sphi 0, %s136
      %s158 = sphi 0, %s160
      %s161 = sphi 0, %s158
      %s162 = sphi 0, %s161
      %s178 = sphi 0, %s162
    $region4: #{reward_criterion.1} parent=1 // loop_header_branch
      %17 = sbr.rel (%p15) target = $region8
    $region5: #{reward_criterion.1} parent=1 // loop_body
      %s19 = ssub.s32 %s14, 1
      %s20 = ssub.s32 %s14, 2
      %s27 = sadd.s32 1, %s22
      %p28 = scmp.ge.s32.totalorder %s27, 1
      %s29 = scalar_select %p28, 0, %s27
      %s30 = sadd.s32 1, %s21
      %s31 = scalar_select %p28, %s30, %s21
      %p32 = scmp.ge.s32.totalorder %s31, 2
      %s33 = scalar_select %p32, 0, %s31
      %s34 = sadd.s32 %s21, %s22
      %p35 = scmp.lt.s32.totalorder %s34, 0
      %s36 = scalar_select %p35, %s34, 0
      %s37 = sadd.s32 %s33, %s29
      %p38 = scmp.lt.s32.totalorder %s37, 0
      %s39 = scalar_select %p38, %s37, 0
      %s40 = ssub.s32 %s36, %s39
      %p41 = scmp.eq.s32.totalorder %s40, 0
      %s43 = sadd.s32 %s42, 1
      %s44 = scalar_select %p41, %s42, %s43
      %p47 = pneg %p41
      %p48 = scmp.eq.s32.totalorder %s14, 1
      %p49 = por %p47, %p48
      %p50 = scmp.ne.s32.totalorder %s42, %s45
      %p51 = scmp.eq.s32.totalorder %s14, 0
      %p52 = por %p50, %p51
      %p53 = scmp.ne.s32.totalorder %s42, %s45
      %p54 = scmp.eq.s32.totalorder %s19, 1
      %p55 = por %p53, %p54
      %p56 = scmp.ne.s32.totalorder %s45, %s46
      %p57 = scmp.eq.s32.totalorder %s19, 0
      %p58 = por %p56, %p57
      %p59 = scmp.ne.s32.totalorder %s45, %s46
      %p60 = scmp.eq.s32.totalorder %s20, 1
      %p61 = por %p59, %p60
      %p63 = scmp.ne.s32.totalorder %s46, %s62
      %p64 = scmp.eq.s32.totalorder %s20, 0
      %p65 = por %p63, %p64
      %s66 = sadd.s32 %s21, %s22
      %p67 = scmp.lt.s32.totalorder %s66, 0
      %s68 = scalar_select %p67, %s66, 0
      %s69 = sadd.s32 %s33, %s29
      %p70 = scmp.lt.s32.totalorder %s69, 0
      %s71 = scalar_select %p70, %s69, 0
      %s72 = ssub.s32 %s68, %s71
      %p73 = scmp.eq.s32.totalorder %s72, 0
      %s75 = sadd.s32 %s74, 1
      %s76 = scalar_select %p73, %s74, %s75
      %p79 = pneg %p73
      %p80 = scmp.eq.s32.totalorder %s14, 1
      %p81 = por %p79, %p80
      %p82 = scmp.ne.s32.totalorder %s74, %s77
      %p83 = scmp.eq.s32.totalorder %s14, 0
      %p84 = por %p82, %p83
      %p85 = scmp.ne.s32.totalorder %s74, %s77
      %p86 = scmp.eq.s32.totalorder %s19, 1
      %p87 = por %p85, %p86
      %p88 = scmp.ne.s32.totalorder %s77, %s78
      %p89 = scmp.eq.s32.totalorder %s19, 0
      %p90 = por %p88, %p89
      %p91 = scmp.ne.s32.totalorder %s77, %s78
      %p92 = scmp.eq.s32.totalorder %s20, 1
      %p93 = por %p91, %p92
      %p95 = scmp.ne.s32.totalorder %s78, %s94
      %p96 = scmp.eq.s32.totalorder %s20, 0
      %p97 = por %p95, %p96
      %s98 = sadd.s32 %s21, %s22
      %p99 = scmp.lt.s32.totalorder %s98, 0
      %s100 = scalar_select %p99, %s98, 0
      %s101 = sadd.s32 %s33, %s29
      %p102 = scmp.lt.s32.totalorder %s101, 0
      %s103 = scalar_select %p102, %s101, 0
      %s104 = ssub.s32 %s100, %s103
      %p105 = scmp.eq.s32.totalorder %s104, 0
      %s107 = sadd.s32 %s106, 1
      %s108 = scalar_select %p105, %s106, %s107
      %p111 = pneg %p105
      %p112 = scmp.eq.s32.totalorder %s14, 1
      %p113 = por %p111, %p112
      %p114 = scmp.ne.s32.totalorder %s106, %s109
      %p115 = scmp.eq.s32.totalorder %s14, 0
      %p116 = por %p114, %p115
      %p117 = scmp.ne.s32.totalorder %s106, %s109
      %p118 = scmp.eq.s32.totalorder %s19, 1
      %p119 = por %p117, %p118
      %p120 = scmp.ne.s32.totalorder %s109, %s110
      %p121 = scmp.eq.s32.totalorder %s19, 0
      %p122 = por %p120, %p121
      %p123 = scmp.ne.s32.totalorder %s109, %s110
      %p124 = scmp.eq.s32.totalorder %s20, 1
      %p125 = por %p123, %p124
      %p127 = scmp.ne.s32.totalorder %s110, %s126
      %p128 = scmp.eq.s32.totalorder %s20, 0
      %p129 = por %p127, %p128
      %s130 = ssub.s32 %s21, %s33
      %p131 = scmp.eq.s32.totalorder %s130, 0
      %s133 = sadd.s32 %s132, 1
      %s134 = scalar_select %p131, %s132, %s133
      %p137 = pneg %p131
      %p138 = scmp.eq.s32.totalorder %s14, 1
      %p139 = por %p137, %p138
      %p140 = scmp.ne.s32.totalorder %s132, %s135
      %p141 = scmp.eq.s32.totalorder %s14, 0
      %p142 = por %p140, %p141
      %p143 = scmp.ne.s32.totalorder %s132, %s135
      %p144 = scmp.eq.s32.totalorder %s19, 1
      %p145 = por %p143, %p144
      %p146 = scmp.ne.s32.totalorder %s135, %s136
      %p147 = scmp.eq.s32.totalorder %s19, 0
      %p148 = por %p146, %p147
      %p149 = scmp.ne.s32.totalorder %s135, %s136
      %p150 = scmp.eq.s32.totalorder %s20, 1
      %p151 = por %p149, %p150
      %p153 = scmp.ne.s32.totalorder %s136, %s152
      %p154 = scmp.eq.s32.totalorder %s20, 0
      %p155 = por %p153, %p154
      %s156 = ssub.s32 %s21, %s33
      %p157 = scmp.eq.s32.totalorder %s156, 0
      %s159 = sadd.s32 %s158, 1
      %s160 = scalar_select %p157, %s158, %s159
      %p163 = pneg %p157
      %p164 = scmp.eq.s32.totalorder %s14, 1
      %p165 = por %p163, %p164
      %p166 = scmp.ne.s32.totalorder %s158, %s161
      %p167 = scmp.eq.s32.totalorder %s14, 0
      %p168 = por %p166, %p167
      %p169 = scmp.ne.s32.totalorder %s158, %s161
      %p170 = scmp.eq.s32.totalorder %s19, 1
      %p171 = por %p169, %p170
      %p172 = scmp.ne.s32.totalorder %s161, %s162
      %p173 = scmp.eq.s32.totalorder %s19, 0
      %p174 = por %p172, %p173
      %p175 = scmp.ne.s32.totalorder %s161, %s162
      %p176 = scmp.eq.s32.totalorder %s20, 1
      %p177 = por %p175, %p176
      %p179 = scmp.ne.s32.totalorder %s162, %s178
      %p180 = scmp.eq.s32.totalorder %s20, 0
      %p181 = por %p179, %p180
      %p182 = scmp.le.s32.totalorder 1, %s14
      %p183 = scmp.lt.s32.totalorder %s14, 3
      %p184 = pnand %p182, %p183
      %p185 = pneg %p184
      // Predicated region
      $region9: #{reward_criterion.1} parent=5 // pred_check
        _
      $region10: #{reward_criterion.1} parent=5 // pred_check_branch
        %187 = sbr.rel (%p184) target = $region12
      $region11: #{reward_criterion.1} parent=5 // pred_region
        %s188 = ssub.s32 %s14, 1
      $region12: #{reward_criterion.1} parent=5 // pred_fallthru
        _
      %p189 = scmp.lt.s32.totalorder %s14, 2
      // Predicated region
      $region13: #{reward_criterion.1} parent=5 // pred_check
        %p190 = pneg %p189
      $region14: #{reward_criterion.1} parent=5 // pred_check_branch
        %192 = sbr.rel (%p190) target = $region16
      $region15: #{reward_criterion.1} parent=5 // pred_region
        // Predicated region
        $region17: #{reward_criterion.1} parent=15 // pred_check
          %p193 = pneg %p52
        $region18: #{reward_criterion.1} parent=15 // pred_check_branch
          %195 = sbr.rel (%p193) target = $region20
        $region19: #{reward_criterion.1} parent=15 // pred_region
          %s196 = sand.u32 %s42, 1
          %s197 = scalar_lea.sflag [#allocation3], %s196
          %s198 = sand.u32 %s42, 1
          %s199 = smul.addr %s198, 2
          %s200 = scalar_lea.vmem [#allocation2], %s199
          %s201 = sadd.s32 %s21, %s22
          %p202 = scmp.lt.s32.totalorder %s201, 0
          %s203 = scalar_select %p202, %s201, 0
          %s205 = ssub.s32 32, 32
          %206 = vsyncadd %s197, %s205
          %s207 = smul.addr %s203, 32
          %s208 = scalar_lea.hbm %s0, %s207
          %s210 = sshll.u32 %s200, 4
          %s211 = int_to_ptr.vmem [resolvable:$true] %s210
          %213 = dma.hbm_to_vmem [thread:$0]  %s208, 32, %s211, %s197
        $region20: #{reward_criterion.1} parent=15 // pred_fallthru
          _
        // Predicated region
        $region21: #{reward_criterion.1} parent=15 // pred_check
          %p214 = pneg %p84
        $region22: #{reward_criterion.1} parent=15 // pred_check_branch
          %216 = sbr.rel (%p214) target = $region24
        $region23: #{reward_criterion.1} parent=15 // pred_region
          %s217 = sadd.s32 %s21, %s22
          %p218 = scmp.lt.s32.totalorder %s217, 0
          %s219 = scalar_select %p218, %s217, 0
          %p220 = scmp.lt.s32.totalorder %s219, 0
          %s221 = scalar_select %p220, %s219, 0
          %s222 = smul.addr %s221, 2
          %s223 = scalar_lea.vmem %s1, %s222
          %s224 = sadd.s32 %s21, %s22
          %p225 = scmp.lt.s32.totalorder %s224, 0
          %s226 = scalar_select %p225, %s224, 0
        $region24: #{reward_criterion.1} parent=15 // pred_fallthru
          _
        // Predicated region
        $region25: #{reward_criterion.1} parent=15 // pred_check
          %p227 = pneg %p116
        $region26: #{reward_criterion.1} parent=15 // pred_check_branch
          %229 = sbr.rel (%p227) target = $region28
        $region27: #{reward_criterion.1} parent=15 // pred_region
          %s230 = sadd.s32 %s21, %s22
          %p231 = scmp.lt.s32.totalorder %s230, 0
          %s232 = scalar_select %p231, %s230, 0
          %p233 = scmp.lt.s32.totalorder %s232, 0
          %s234 = scalar_select %p233, %s232, 0
          %s235 = smul.addr %s234, 2
          %s236 = scalar_lea.vmem %s2, %s235
          %s237 = sadd.s32 %s21, %s22
          %p238 = scmp.lt.s32.totalorder %s237, 0
          %s239 = scalar_select %p238, %s237, 0
        $region28: #{reward_criterion.1} parent=15 // pred_fallthru
          _
      $region16: #{reward_criterion.1} parent=5 // pred_fallthru
        _
      %p240 = scmp.le.s32.totalorder 1, %s14
      %p241 = scmp.lt.s32.totalorder %s14, 3
      %p242 = pnand %p240, %p241
      %p243 = pneg %p242
      // Predicated region
      $region29: #{reward_criterion.1} parent=5 // pred_check
        _
      $region30: #{reward_criterion.1} parent=5 // pred_check_branch
        %245 = sbr.rel (%p242) target = $region32
      $region31: #{reward_criterion.1} parent=5 // pred_region
        %s246 = ssub.s32 %s14, 1
        %s247 = sand.u32 %s45, 1
        %s248 = scalar_lea.sflag [#allocation3], %s247
        %s249 = sand.u32 %s45, 1
        %s250 = smul.addr %s249, 2
        %s251 = scalar_lea.vmem [#allocation2], %s250
        // Predicated region
        $region33: #{reward_criterion.1} parent=31 // pred_check
          %p252 = pneg %p58
        $region34: #{reward_criterion.1} parent=31 // pred_check_branch
          %254 = sbr.rel (%p252) target = $region36
        $region35: #{reward_criterion.1} parent=31 // pred_region
          %255 = dma.done %s248, 32
        $region36: #{reward_criterion.1} parent=31 // pred_fallthru
          _
        %s256 = sand.u32 %s45, 1
        %s257 = scalar_lea.sflag [#allocation3], %s256
        %s258 = sand.u32 %s45, 1
        %s259 = smul.addr %s258, 2
        %s260 = scalar_lea.vmem [#allocation2], %s259
        %p261 = pneg %p58
        %p262 = pneg %p55
        %s263 = sadd.s32 %s23, %s24
        %p264 = scmp.lt.s32.totalorder %s263, 0
        %s265 = scalar_select %p264, %s263, 0
        %p266 = scmp.lt.s32.totalorder %s265, 0
        %s267 = scalar_select %p266, %s265, 0
        %s268 = smul.addr %s267, 2
        %s269 = scalar_lea.vmem %s1, %s268
        %p270 = pneg %p90
        %p271 = pneg %p87
        %s272 = sadd.s32 %s23, %s24
        %p273 = scmp.lt.s32.totalorder %s272, 0
        %s274 = scalar_select %p273, %s272, 0
        %p275 = scmp.lt.s32.totalorder %s274, 0
        %s276 = scalar_select %p275, %s274, 0
        %s277 = smul.addr %s276, 2
        %s278 = scalar_lea.vmem %s2, %s277
        %p279 = pneg %p122
        %p280 = pneg %p119
        %p281 = pneg %p148
        %p282 = pneg %p145
        %p283 = scmp.lt.s32.totalorder %s23, 1
        %s284 = scalar_select %p283, %s23, 1
        %s285 = scalar_lea.vmem %s3, %s284
        %p286 = pneg %p174
        %p287 = pneg %p171
        %p288 = scmp.lt.s32.totalorder %s23, 1
        %s289 = scalar_select %p288, %s23, 1
        %s290 = scalar_lea.vmem %s4, %s289
        %s291 = sadd.s32 %s23, %s24
        %p292 = scmp.lt.s32.totalorder %s291, 0
        %s293 = scalar_select %p292, %s291, 0
        %s294 = sadd.s32 %s23, %s24
        %p295 = scmp.lt.s32.totalorder %s294, 0
        %s296 = scalar_select %p295, %s294, 0
        %p297 = scmp.lt.s32.totalorder %s296, 0
        %s298 = scalar_select %p297, %s296, 0
        %s299 = smul.addr %s298, 2
        %s300 = scalar_lea.vmem %s1, %s299
        %s301 = sadd.s32 %s23, %s24
        %p302 = scmp.lt.s32.totalorder %s301, 0
        %s303 = scalar_select %p302, %s301, 0
        %s304 = sadd.s32 %s23, %s24
        %p305 = scmp.lt.s32.totalorder %s304, 0
        %s306 = scalar_select %p305, %s304, 0
        %p307 = scmp.lt.s32.totalorder %s306, 0
        %s308 = scalar_select %p307, %s306, 0
        %s309 = smul.addr %s308, 2
        %s310 = scalar_lea.vmem %s2, %s309
        %s311 = sadd.s32 %s23, %s24
        %p312 = scmp.lt.s32.totalorder %s311, 0
        %s313 = scalar_select %p312, %s311, 0
        %p314 = scmp.lt.s32.totalorder %s23, 1
        %s315 = scalar_select %p314, %s23, 1
        %s316 = scalar_lea.vmem %s3, %s315
        %p317 = scmp.lt.s32.totalorder %s23, 1
        %s318 = scalar_select %p317, %s23, 1
        %s319 = scalar_lea.vmem %s4, %s318
        %p320 = scmp.eq.s32.totalorder %s24, 0
        // Predicated region
        $region37: #{reward_criterion.1} parent=31 // pred_check
          %p321 = pneg %p320
        $region38: #{reward_criterion.1} parent=31 // pred_check_branch
          %323 = sbr.rel (%p321) target = $region40
        $region39: #{reward_criterion.1} parent=31 // pred_region
          %vm324 = vcmask 0
          %325 = vst.msk [vmem:[%s316] sm:$0x1] %vm324, 0.0
          %326 = vst.msk [vmem:[%s319] sm:$0x1] %vm324, 0.0
        $region40: #{reward_criterion.1} parent=31 // pred_fallthru
          _
        %s327 = sadd.s32 %s23, %s24
        %s328 = smul.u32 %s327, 2
        %v329 = vlaneseq
        %v330 = vshrl.u32 %v329, 7
        %v331 = vstv %s328
        %v332 = vadd.s32 %v331, %v330
        %vm333 = vcmp.lt.s32.totalorder %v332, 2
        %v334 = vld [vmem:[%s251] sm:$0x3]
        %v335 = vsub.f32 0.0, %v334
        %v336 = vld [vmem:[%s310] sm:$0x3]
        %v337 = vmul.f32 %v335, %v336
        %v338 = vld [vmem:[%s300] sm:$0x3]
        %vm339 = vcmp.gt.s32.totalorder %v338, 0
        %v340 = vsel %vm333, %v337, 0.0
        %v341 = vadd.f32 %v340, 0.0
        %vm342 = vcmask 1024
        %v343 = vsel %vm342, %v341, 0.0
        %v344 = vrot.slane %v343, 4
        %v345 = vadd.f32 %v343, %v344
        %v346 = vrot.slane %v345, 2
        %v347 = vadd.f32 %v345, %v346
        %v348 = vrot.slane %v347, 1
        %v349 = vadd.f32 %v347, %v348
        %v350 = vsel %vm333, 1, 0
        %v351 = vcvt.s32.f32 %v350
        %v352 = vadd.f32 %v351, 0.0
        %vm353 = vcmask 1041408
        %v354 = vsel %vm353, %v352, 0.0
        %v355 = vrot.slane %v354, 4
        %v356 = vadd.f32 %v354, %v355
        %v357 = vrot.slane %v356, 2
        %v358 = vadd.f32 %v356, %v357
        %v359 = vrot.slane %v358, 1
        %v360 = vadd.f32 %v358, %v359
        %vm361 = vcmp.eq.s32.totalorder %v350, 1
        %vm362 = vmand %vm361, %vm339
        %364 = vrot.lane.b32.xlu0 %v337, 127
        %v365 = vpop.permute.xlu0 %364
        %v367 = vsel %vm362, %v365, 0.0
        %vm368 = vcmask 50176
        %v369 = vsel %vm368, %v367, 0.0
        %370 = vadd.xlane.f32.xlu0 %v369
        %v371 = vpop.xlane.xlu0 %370
        %v372 = vsel %vm353, %v371, 0.0
        %v373 = vrot.slane %v372, 4
        %v374 = vadd.f32 %v372, %v373
        %v375 = vrot.slane %v374, 2
        %v376 = vadd.f32 %v374, %v375
        %v377 = vrot.slane %v376, 1
        %v378 = vadd.f32 %v376, %v377
        %v379 = vadd.f32 %v349, %v378
        %v380 = vsel %vm362, 1, 0
        %v381 = vcvt.s32.f32 %v380
        %v382 = vsel %vm368, %v381, 0.0
        %383 = vadd.xlane.f32.xlu0 %v382
        %v384 = vpop.xlane.xlu0 %383
        %v385 = vsel %vm353, %v384, 0.0
        %v386 = vrot.slane %v385, 4
        %v387 = vadd.f32 %v385, %v386
        %v388 = vrot.slane %v387, 2
        %v389 = vadd.f32 %v387, %v388
        %v390 = vrot.slane %v389, 1
        %v391 = vadd.f32 %v389, %v390
        %v392 = vadd.f32 %v360, %v391
        %v393 = vld [vmem:[%s316] sm:$0x1]
        %v394 = vadd.f32 %v393, %v379
        %vm395 = vcmask 0
        %396 = vst.msk [vmem:[%s316] sm:$0x1] %vm395, %v394
        %v397 = vld [vmem:[%s319] sm:$0x1]
        %v398 = vadd.f32 %v397, %v392
        %399 = vst.msk [vmem:[%s319] sm:$0x1] %vm395, %v398
        %p400 = scmp.lt.s32.totalorder %s23, 1
        %s401 = scalar_select %p400, %s23, 1
        %s402 = scalar_lea.vmem %s3, %s401
        %p403 = scmp.lt.s32.totalorder %s23, 1
        %s404 = scalar_select %p403, %s23, 1
        %s405 = scalar_lea.vmem %s4, %s404
        // Predicated region
        $region41: #{reward_criterion.1} parent=31 // pred_check
          %p406 = pneg %p145
        $region42: #{reward_criterion.1} parent=31 // pred_check_branch
          %408 = sbr.rel (%p406) target = $region44
        $region43: #{reward_criterion.1} parent=31 // pred_region
          _
        $region44: #{reward_criterion.1} parent=31 // pred_fallthru
          _
        // Predicated region
        $region45: #{reward_criterion.1} parent=31 // pred_check
          %p409 = pneg %p171
        $region46: #{reward_criterion.1} parent=31 // pred_check_branch
          %411 = sbr.rel (%p409) target = $region48
        $region47: #{reward_criterion.1} parent=31 // pred_region
          _
        $region48: #{reward_criterion.1} parent=31 // pred_fallthru
          _
      $region32: #{reward_criterion.1} parent=5 // pred_fallthru
        _
      %p412 = scmp.le.s32.totalorder 2, %s14
      // Predicated region
      $region49: #{reward_criterion.1} parent=5 // pred_check
        %p413 = pneg %p412
      $region50: #{reward_criterion.1} parent=5 // pred_check_branch
        %415 = sbr.rel (%p413) target = $region52
      $region51: #{reward_criterion.1} parent=5 // pred_region
        %s416 = ssub.s32 %s14, 2
        // Predicated region
        $region53: #{reward_criterion.1} parent=51 // pred_check
          %p417 = pneg %p151
        $region54: #{reward_criterion.1} parent=51 // pred_check_branch
          %419 = sbr.rel (%p417) target = $region56
        $region55: #{reward_criterion.1} parent=51 // pred_region
          %p420 = scmp.lt.s32.totalorder %s25, 1
          %s421 = scalar_select %p420, %s25, 1
          %s422 = scalar_lea.vmem %s3, %s421
        $region56: #{reward_criterion.1} parent=51 // pred_fallthru
          _
        // Predicated region
        $region57: #{reward_criterion.1} parent=51 // pred_check
          %p423 = pneg %p177
        $region58: #{reward_criterion.1} parent=51 // pred_check_branch
          %425 = sbr.rel (%p423) target = $region60
        $region59: #{reward_criterion.1} parent=51 // pred_region
          %p426 = scmp.lt.s32.totalorder %s25, 1
          %s427 = scalar_select %p426, %s25, 1
          %s428 = scalar_lea.vmem %s4, %s427
        $region60: #{reward_criterion.1} parent=51 // pred_fallthru
          _
      $region52: #{reward_criterion.1} parent=5 // pred_fallthru
        _
    $region6: #{reward_criterion.1} parent=1 // loop_footer
      %s18 = sadd.s32 1, %s14
    $region7: #{reward_criterion.1} parent=1 // loop_footer_branch
      %13 = sbr.rel target = $region3
    $region8: #{reward_criterion.1} parent=1 // loop_exit
      _
    %429 = vsyncpa [#allocation3], 1
    %s430 = scalar_lea.sflag [#allocation3], 1
    %431 = vsyncpa %s430, 1

</llo_original>
